<compile_context>
chip_gen: v6e
topology: v6e:2x2x1
jax: 0.10.0
libtpu: 0.0.40
codegen_flags: <defaults>
</compile_context>

<pallas_src>
import functools

import jax
import jax.numpy as jnp
import numpy as np
from jax import lax
from jax.experimental import pallas as pl
from jax.experimental.pallas import tpu as pltpu


_MAX_TM = 1024                    # lane tile over Hout*Wout (multiple of 128 when tiled)
_MAX_TW = 1024                    # lane tile over W for the standalone hardtanh kernel
_VMEM_LIMIT = 48 * 1024 * 1024    # explicit scoped-VMEM budget (fits v7x's 64 MiB)


# ----------------------------- Pallas kernels ------------------------------


def _conv_fused_kernel(seq_ref, w_ref, b_ref, widx_ref, p_ref, o_ref, *, clamps):
    """Lane-dense conv tile: (Cout,K)@(K,TM) + bias [+ hardtanh chain], then time mask."""
    n = pl.program_id(0)
    # MXU matmul, f32 accumulation; output tile is (Cout, TM) with TM on lanes.
    acc = jnp.dot(w_ref[...], p_ref[0], preferred_element_type=jnp.float32)
    acc = acc + b_ref[...]                               # (Cout, 1) lane-broadcast bias
    for mn, mx in clamps:                                # fused Hardtanh epilogue(s)
        acc = jnp.clip(acc, mn, mx)
    # Precomputed w-index row (1, TM) vs scalar seq length -- no per-element modulo.
    valid = widx_ref[...] < seq_ref[n]
    o_ref[0] = jnp.where(valid, acc, 0.0).astype(o_ref.dtype)


def _hardtanh_mask_kernel(seq_ref, x_ref, o_ref, *, clamps, tw):
    """Standalone clamp-chain + time mask on a (1, C*H, TW) tile (W-tiled)."""
    n = pl.program_id(0)
    w0 = pl.program_id(1) * tw
    y = x_ref[...]
    for mn, mx in clamps:
        y = jnp.clip(y, mn, mx)
    w_idx = w0 + lax.broadcasted_iota(jnp.int32, x_ref.shape, 2)
    valid = w_idx < seq_ref[n]
    o_ref[...] = jnp.where(valid, y, 0.0).astype(o_ref.dtype)


# ------------------------------ layer wrappers ------------------------------


def _new_seq_lengths_conv(seq_lengths, kw, sw, pw, dw=1):
    # matches get_new_sequence_lengths for nn.Conv2d (dim-1 i.e. time/W params)
    numerator = seq_lengths.astype(jnp.int32) + 2 * pw - dw * (kw - 1) - 1
    return (numerator // sw).astype(jnp.int32) + 1


def _pick_tm(M, K):
    """Lane tile: full M if small, else <=1024 and shrunk so the patches tile stays ~4MiB."""
    if M <= _MAX_TM:
        return M
    tm = _MAX_TM
    while tm > 128 and (K * tm * 4) > (4 << 20):
        tm //= 2
    return tm


def conv2d_mask(x, weight, bias, seq_lengths, stride, padding, clamps=()):
    """Conv2d (NCHW, OIHW weights) + per-batch time masking (+ fused Hardtanh chain)."""
    N, Cin, H, W = x.shape
    Cout, _, kh, kw = weight.shape
    sh, sw = stride
    ph, pw = padding
    Hout = (H + 2 * ph - kh) // sh + 1
    Wout = (W + 2 * pw - kw) // sw + 1
    new_seq = _new_seq_lengths_conv(seq_lengths, kw, sw, pw)

    # im2col with K *before* the flattened spatial axis: patches[n, ci*kh*kw+ky*kw+kx,
    # ho*Wout+wo].  Pure stack+reshape, no XLA transpose; output needs no transpose either.
    xp = jnp.pad(x, ((0, 0), (0, 0), (ph, ph), (pw, pw)))
    slices = [xp[:, :, ky:ky + sh * Hout:sh, kx:kx + sw * Wout:sw]
              for ky in range(kh) for kx in range(kw)]
    K = Cin * kh * kw
    M = Hout * Wout
    patches = jnp.stack(slices, axis=2).reshape(N, K, M)          # (N, K, M)
    wmat = weight.reshape(Cout, K)                                # (Cout, K)
    bmat = bias.reshape(Cout, 1)                                  # (Cout, 1)
    w_idx = (jnp.arange(M, dtype=jnp.int32) % Wout).reshape(1, M)  # tiny, computed once

    TM = _pick_tm(M, K)
    grid = (N, pl.cdiv(M, TM))

    out = pl.pallas_call(
        functools.partial(_conv_fused_kernel, clamps=tuple(clamps)),
        out_shape=jax.ShapeDtypeStruct((N, Cout, M), x.dtype),
        grid_spec=pltpu.PrefetchScalarGridSpec(
            num_scalar_prefetch=1,
            grid=grid,
            in_specs=[
                pl.BlockSpec((Cout, K), lambda n, m, sl: (0, 0)),      # weights (resident)
                pl.BlockSpec((Cout, 1), lambda n, m, sl: (0, 0)),      # bias    (resident)
                pl.BlockSpec((1, TM), lambda n, m, sl: (0, m)),        # w-index row
                pl.BlockSpec((1, K, TM), lambda n, m, sl: (n, 0, m)),  # patches tile
            ],
            out_specs=pl.BlockSpec((1, Cout, TM), lambda n, m, sl: (n, 0, m)),
        ),
        compiler_params=pltpu.CompilerParams(
            dimension_semantics=("parallel", "parallel"),
            vmem_limit_bytes=_VMEM_LIMIT),
    )(new_seq, wmat, bmat, w_idx, patches)

    # (N, Cout, Hout*Wout) -> NCHW is a pure (metadata-only) reshape.
    out = out.reshape(N, Cout, Hout, Wout)
    return out, new_seq


def hardtanh_mask(x, seq_lengths, clamps):
    """Standalone Hardtanh chain + time masking (seq_lengths unchanged for non-conv modules)."""
    N, C, H, W = x.shape
    seq = seq_lengths.astype(jnp.int32)
    xf = x.reshape(N, C * H, W)                        # metadata-only view
    TW = W if W <= _MAX_TW else _MAX_TW
    grid = (N, pl.cdiv(W, TW))
    out = pl.pallas_call(
        functools.partial(_hardtanh_mask_kernel, clamps=tuple(clamps), tw=TW),
        out_shape=jax.ShapeDtypeStruct(xf.shape, x.dtype),
        grid_spec=pltpu.PrefetchScalarGridSpec(
            num_scalar_prefetch=1,
            grid=grid,
            in_specs=[pl.BlockSpec((1, C * H, TW), lambda n, m, sl: (n, 0, m))],
            out_specs=pl.BlockSpec((1, C * H, TW), lambda n, m, sl: (n, 0, m)),
        ),
        compiler_params=pltpu.CompilerParams(
            dimension_semantics=("parallel", "parallel"),
            vmem_limit_bytes=_VMEM_LIMIT),
    )(seq, xf)
    return out.reshape(N, C, H, W), seq


def mask_cnn_forward(x, seq_lengths, layers):
    """Equivalent of MaskCNN.forward; conv2d + following hardtanh run fuse into one kernel."""
    out = x
    seq = seq_lengths.astype(jnp.int32)
    i = 0
    while i < len(layers):
        layer = layers[i]
        if layer["type"] == "conv2d":
            clamps = []
            j = i + 1
            while j < len(layers) and layers[j]["type"] == "hardtanh":
                clamps.append((float(layers[j]["min_val"]), float(layers[j]["max_val"])))
                j += 1
            out, seq = conv2d_mask(out, layer["weight"], layer["bias"], seq,
                                   layer["stride"], layer["padding"], clamps=tuple(clamps))
            i = j
        elif layer["type"] == "hardtanh":
            clamps = []
            j = i
            while j < len(layers) and layers[j]["type"] == "hardtanh":
                clamps.append((float(layers[j]["min_val"]), float(layers[j]["max_val"])))
                j += 1
            out, seq = hardtanh_mask(out, seq, tuple(clamps))
            i = j
        else:
            raise ValueError(layer["type"])
    return out, seq


# ------------------------------ pure-JAX reference ------------------------------


def reference_forward(x, seq_lengths, layers):
    out = x
    seq = np.asarray(seq_lengths).astype(np.int32)
    for layer in layers:
        if layer["type"] == "conv2d":
            sh, sw = layer["stride"]
            ph, pw = layer["padding"]
            kw = layer["weight"].shape[3]
            out = lax.conv_general_dilated(
                out, layer["weight"], (sh, sw), ((ph, ph), (pw, pw)),
                dimension_numbers=("NCHW", "OIHW", "NCHW"))
            out = out + layer["bias"][None, :, None, None]
            seq = ((seq + 2 * pw - (kw - 1) - 1) // sw) + 1
        else:
            out = jnp.clip(out, layer["min_val"], layer["max_val"])
        Wn = out.shape[3]
        mask = np.arange(Wn)[None, None, None, :] < seq[:, None, None, None]
        out = out * jnp.asarray(mask, out.dtype)
    return out, seq


# ----------------------------------- main -----------------------------------


if __name__ == "__main__":
    key = jax.random.PRNGKey(0)
    k1, k2, k3, k4, k5 = jax.random.split(key, 5)

    # DS2-style input: (batch, 1, freq, time)
    N, Cin, H, W = 2, 1, 16, 16
    x = jax.random.normal(k1, (N, Cin, H, W), jnp.float32)
    seq_lengths = jnp.array([16, 12], jnp.int32)

    # Deterministic synthetic parameters for the wrapped Sequential:
    #   Hardtanh(-1,1)  <- leading standalone clamp to exercise the non-fused kernel path,
    #   Conv2d(1->8, k=(3,3), s=(2,2), p=(1,1)), Hardtanh(0,20),
    #   Conv2d(8->8, k=(3,3), s=(2,1), p=(1,1)), Hardtanh(0,20), Hardtanh(0,10).
    C1, C2 = 8, 8
    w1 = 0.1 * jax.random.normal(k2, (C1, Cin, 3, 3), jnp.float32)
    b1 = 0.1 * jax.random.normal(k3, (C1,), jnp.float32)
    w2 = 0.1 * jax.random.normal(k4, (C2, C1, 3, 3), jnp.float32)
    b2 = 0.1 * jax.random.normal(k5, (C2,), jnp.float32)

    layers = [
        {"type": "hardtanh", "min_val": -1.0, "max_val": 1.0},
        {"type": "conv2d", "weight": w1, "bias": b1, "stride": (2, 2), "padding": (1, 1)},
        {"type": "hardtanh", "min_val": 0.0, "max_val": 20.0},
        {"type": "conv2d", "weight": w2, "bias": b2, "stride": (2, 1), "padding": (1, 1)},
        {"type": "hardtanh", "min_val": 0.0, "max_val": 20.0},
        {"type": "hardtanh", "min_val": 0.0, "max_val": 10.0},
    ]

    out, seq_out = mask_cnn_forward(x, seq_lengths, layers)
    out = jax.block_until_ready(out)
    seq_out = jax.block_until_ready(seq_out)

    ref_out, ref_seq = reference_forward(x, seq_lengths, layers)
    np.testing.assert_allclose(np.asarray(out), np.asarray(ref_out), rtol=1e-4, atol=1e-4)
    assert list(np.asarray(seq_out)) == list(np.asarray(ref_seq))

    print("KERNEL_OK")
</pallas_src>

<mosaic_0001>
module attributes {stable_mosaic.version = 11 : i64} {
  func.func @_hardtanh_mask_kernel(%arg0: i32, %arg1: i32, %arg2: memref<2xi32, #tpu.memory_space<smem>>, %arg3: memref<1x16x16xf32, #tpu.memory_space<vmem>>, %arg4: memref<1x16x16xf32, #tpu.memory_space<vmem>>) attributes {dimension_semantics = [#tpu.dimension_semantics<parallel>, #tpu.dimension_semantics<parallel>], iteration_bounds = array<i64: 2, 1>, scalar_prefetch = 1 : i64, scratch_operands = 0 : i64, tpu.core_type = #tpu.core_type<tc>, window_params = [{transform_indices = @transform_0, window_bounds = array<i64: 1, 16, 16>}, {transform_indices = @transform_1, window_bounds = array<i64: 1, 16, 16>}]} {
    %c16_i32 = arith.constant 16 : i32
    %0 = arith.muli %arg1, %c16_i32 : i32
    %c0 = arith.constant 0 : index
    %c0_0 = arith.constant 0 : index
    %c0_1 = arith.constant 0 : index
    %1 = vector.load %arg3[%c0, %c0_0, %c0_1] : memref<1x16x16xf32, #tpu.memory_space<vmem>>, vector<1x16x16xf32>
    %cst = arith.constant -1.000000e+00 : f32
    %cst_2 = arith.constant 1.000000e+00 : f32
    %2 = vector.broadcast %cst : f32 to vector<1x16x16xf32>
    %3 = arith.maximumf %2, %1 : vector<1x16x16xf32>
    %4 = vector.broadcast %cst_2 : f32 to vector<1x16x16xf32>
    %5 = arith.minimumf %4, %3 : vector<1x16x16xf32>
    %6 = tpu.iota {dimensions = array<i32: 2>} : vector<1x16x16xi32>
    %7 = vector.broadcast %0 : i32 to vector<1x16x16xi32>
    %8 = arith.addi %7, %6 : vector<1x16x16xi32>
    %9 = arith.index_cast %arg0 : i32 to index
    %10 = memref.load %arg2[%9] : memref<2xi32, #tpu.memory_space<smem>>
    %11 = vector.broadcast %10 : i32 to vector<1x16x16xi32>
    %12 = arith.cmpi slt, %8, %11 : vector<1x16x16xi32>
    %cst_3 = arith.constant 0.000000e+00 : f32
    %13 = vector.broadcast %cst_3 : f32 to vector<1x16x16xf32>
    %14 = arith.select %12, %5, %13 : vector<1x16x16xi1>, vector<1x16x16xf32>
    %c0_4 = arith.constant 0 : index
    %c0_5 = arith.constant 0 : index
    %c0_6 = arith.constant 0 : index
    %15 = vector.load %arg4[%c0_4, %c0_5, %c0_6] : memref<1x16x16xf32, #tpu.memory_space<vmem>>, vector<1x16x16xf32>
    tpu.vector_store %arg4[%c0_4, %c0_5, %c0_6], %14 {strides = array<i32>} : memref<1x16x16xf32, #tpu.memory_space<vmem>>, vector<1x16x16xf32>,
    return
  }
  func.func @transform_0(%arg0: i32, %arg1: i32, %arg2: memref<2xi32, #tpu.memory_space<smem>>) -> (i32, i32, i32) {
    %c0_i32 = arith.constant 0 : i32
    %c0_i32_0 = arith.constant 0 : i32
    return %arg0, %c0_i32, %arg1 : i32, i32, i32
  }
  func.func @transform_1(%arg0: i32, %arg1: i32, %arg2: memref<2xi32, #tpu.memory_space<smem>>) -> (i32, i32, i32) {
    %c0_i32 = arith.constant 0 : i32
    %c0_i32_0 = arith.constant 0 : i32
    return %arg0, %c0_i32, %arg1 : i32, i32, i32
  }
}

</mosaic_0001>

<llo_original>
// kernel: tpu_custom_call.1
$region0: #{tpu_custom_call.1}
  #allocation0 [shape = 'u32[]', space=smem, size = 0x4, offset = 0x4, fixed_abs, tag = 'smem constant byte address 0x4 - core index']
  #allocation1 [shape = 'u32[144,128]{1,0:T(1,128)}', space=vmem, size = 0x12000, scoped, tag = 'internal scratch']
  #allocation2 [shape = 's32[1]{0}', space=sflag, size = 0x4, scoped, tag = 'scoped memory for tpu_custom_call.1']
  #allocation3 [shape = 'u8[512]{0}', space=smem, size = 0x200, scoped, tag = 'prefetched SMEM operand 0']
  %s0 = inlined_call_operand.hbm [shape: s32[2], index: 0, kind: input, shape index: {}]
  %s1 = inlined_call_operand.hbm [shape: f32[2,16,16], index: 1, kind: input, shape index: {}]
  %s2 = inlined_call_operand.hbm [shape: f32[2,16,16], index: 2, kind: output, shape index: {}]
  %s3 = sld [smem:[#allocation0]]
  $region41: #{tpu_custom_call.1} parent=0
    _
  %s5 = ssub.s32 1, %s3
  %s6 = scalar_select 0, %s5, %s3
  %8 = dma.hbm_to_smem %s0, 16, [#allocation3], [#allocation2]
  %9 = dma.done [#allocation2], 16
  %10 = sfence
  $region1: #{tpu_custom_call.1} parent=0
    #allocation4 [shape = 'u8[16384]{0}', space=vmem, size = 0x4000, scoped, tag = 'input window, operand 1']
    #allocation5 [shape = 's32[2]{0}', space=sflag, size = 0x8, scoped, tag = 'scoped memory for tpu_custom_call.1']
    #allocation6 [shape = 's32[2]{0}', space=sflag, size = 0x8, scoped, tag = 'scoped memory for tpu_custom_call.1']
    #allocation7 [shape = 'u8[16384]{0}', space=vmem, size = 0x4000, scoped, tag = 'output window, operand 0']
    %11 = vsyncpa [#allocation5], 0
    %s12 = scalar_lea.sflag [#allocation5], 1
    %13 = vsyncpa %s12, 0
    %14 = vsyncpa [#allocation6], 0
    %s15 = scalar_lea.sflag [#allocation6], 1
    %16 = vsyncpa %s15, 0
    loop: start=0, step=1, limit=4
    $region2: #{tpu_custom_call.1} parent=1 // loop_pre_header
      _
    $region3: #{tpu_custom_call.1} parent=1 // loop_header
      %s18 = sphi 0, %s22
      %p19 = scmp.ge.s32.totalorder %s18, 4
      %s25 = sphi 0, %s37
      %s26 = sphi 0, %s33
      %s27 = sphi 0, %s25
      %s28 = sphi 0, %s26
      %s29 = sphi 0, %s27
      %s30 = sphi 0, %s28
      %s42 = sphi 0, %s44
      %s45 = sphi 0, %s42
      %s46 = sphi 0, %s45
      %s62 = sphi 0, %s46
      %s70 = sphi 0, %s72
      %s73 = sphi 0, %s70
      %s74 = sphi 0, %s73
      %s90 = sphi 0, %s74
    $region4: #{tpu_custom_call.1} parent=1 // loop_header_branch
      %21 = sbr.rel (%p19) target = $region8
    $region5: #{tpu_custom_call.1} parent=1 // loop_body
      %s23 = ssub.s32 %s18, 1
      %s24 = ssub.s32 %s18, 2
      %s31 = sadd.s32 1, %s26
      %p32 = scmp.ge.s32.totalorder %s31, 1
      %s33 = scalar_select %p32, 0, %s31
      %s34 = sadd.s32 1, %s25
      %s35 = scalar_select %p32, %s34, %s25
      %p36 = scmp.ge.s32.totalorder %s35, 2
      %s37 = scalar_select %p36, 0, %s35
      %s38 = ssub.s32 %s25, %s37
      %s39 = ssub.s32 %s26, %s33
      %s40 = sor.u32 %s38, %s39
      %p41 = scmp.eq.s32.totalorder %s40, 0
      %s43 = sadd.s32 %s42, 1
      %s44 = scalar_select %p41, %s42, %s43
      %p47 = pneg %p41
      %p48 = scmp.eq.s32.totalorder %s18, 1
      %p49 = por %p47, %p48
      %p50 = scmp.ne.s32.totalorder %s42, %s45
      %p51 = scmp.eq.s32.totalorder %s18, 0
      %p52 = por %p50, %p51
      %p53 = scmp.ne.s32.totalorder %s42, %s45
      %p54 = scmp.eq.s32.totalorder %s23, 1
      %p55 = por %p53, %p54
      %p56 = scmp.ne.s32.totalorder %s45, %s46
      %p57 = scmp.eq.s32.totalorder %s23, 0
      %p58 = por %p56, %p57
      %p59 = scmp.ne.s32.totalorder %s45, %s46
      %p60 = scmp.eq.s32.totalorder %s24, 1
      %p61 = por %p59, %p60
      %p63 = scmp.ne.s32.totalorder %s46, %s62
      %p64 = scmp.eq.s32.totalorder %s24, 0
      %p65 = por %p63, %p64
      %s66 = ssub.s32 %s25, %s37
      %s67 = ssub.s32 %s26, %s33
      %s68 = sor.u32 %s66, %s67
      %p69 = scmp.eq.s32.totalorder %s68, 0
      %s71 = sadd.s32 %s70, 1
      %s72 = scalar_select %p69, %s70, %s71
      %p75 = pneg %p69
      %p76 = scmp.eq.s32.totalorder %s18, 1
      %p77 = por %p75, %p76
      %p78 = scmp.ne.s32.totalorder %s70, %s73
      %p79 = scmp.eq.s32.totalorder %s18, 0
      %p80 = por %p78, %p79
      %p81 = scmp.ne.s32.totalorder %s70, %s73
      %p82 = scmp.eq.s32.totalorder %s23, 1
      %p83 = por %p81, %p82
      %p84 = scmp.ne.s32.totalorder %s73, %s74
      %p85 = scmp.eq.s32.totalorder %s23, 0
      %p86 = por %p84, %p85
      %p87 = scmp.ne.s32.totalorder %s73, %s74
      %p88 = scmp.eq.s32.totalorder %s24, 1
      %p89 = por %p87, %p88
      %p91 = scmp.ne.s32.totalorder %s74, %s90
      %p92 = scmp.eq.s32.totalorder %s24, 0
      %p93 = por %p91, %p92
      %p94 = scmp.le.s32.totalorder 1, %s18
      %p95 = scmp.lt.s32.totalorder %s18, 3
      %p96 = pnand %p94, %p95
      %p97 = pneg %p96
      // Predicated region
      $region9: #{tpu_custom_call.1} parent=5 // pred_check
        _
      $region10: #{tpu_custom_call.1} parent=5 // pred_check_branch
        %99 = sbr.rel (%p96) target = $region12
      $region11: #{tpu_custom_call.1} parent=5 // pred_region
        %s100 = ssub.s32 %s18, 1
      $region12: #{tpu_custom_call.1} parent=5 // pred_fallthru
        _
      %p101 = scmp.lt.s32.totalorder %s18, 2
      // Predicated region
      $region13: #{tpu_custom_call.1} parent=5 // pred_check
        %p102 = pneg %p101
      $region14: #{tpu_custom_call.1} parent=5 // pred_check_branch
        %104 = sbr.rel (%p102) target = $region16
      $region15: #{tpu_custom_call.1} parent=5 // pred_region
        // Predicated region
        $region17: #{tpu_custom_call.1} parent=15 // pred_check
          %p105 = pneg %p52
        $region18: #{tpu_custom_call.1} parent=15 // pred_check_branch
          %107 = sbr.rel (%p105) target = $region20
        $region19: #{tpu_custom_call.1} parent=15 // pred_region
          %s108 = sand.u32 %s42, 1
          %s109 = scalar_lea.sflag [#allocation5], %s108
          %s110 = sand.u32 %s42, 1
          %s111 = smul.addr %s110, 16
          %s112 = scalar_lea.vmem [#allocation4], %s111
          %s114 = ssub.s32 256, 256
          %115 = vsyncadd %s109, %s114
          %s116 = smul.addr %s25, 2
          %s117 = sadd.s32 %s26, %s116
          %s118 = smul.addr %s117, 128
          %s119 = scalar_lea.hbm %s1, %s118
          %s120 = sshll.u32 %s112, 4
          %s121 = int_to_ptr.vmem [resolvable:$true] %s120
          %126 = dma.hbm_to_vmem [thread:$0]  %s119, 256, %s121, %s109, 128, 128, 8
        $region20: #{tpu_custom_call.1} parent=15 // pred_fallthru
          _
      $region16: #{tpu_custom_call.1} parent=5 // pred_fallthru
        _
      %p127 = scmp.le.s32.totalorder 1, %s18
      %p128 = scmp.lt.s32.totalorder %s18, 3
      %p129 = pnand %p127, %p128
      %p130 = pneg %p129
      // Predicated region
      $region21: #{tpu_custom_call.1} parent=5 // pred_check
        _
      $region22: #{tpu_custom_call.1} parent=5 // pred_check_branch
        %132 = sbr.rel (%p129) target = $region24
      $region23: #{tpu_custom_call.1} parent=5 // pred_region
        %s133 = ssub.s32 %s18, 1
        %s134 = sand.u32 %s45, 1
        %s135 = scalar_lea.sflag [#allocation5], %s134
        %s136 = sand.u32 %s45, 1
        %s137 = smul.addr %s136, 16
        %s138 = scalar_lea.vmem [#allocation4], %s137
        // Predicated region
        $region25: #{tpu_custom_call.1} parent=23 // pred_check
          %p139 = pneg %p58
        $region26: #{tpu_custom_call.1} parent=23 // pred_check_branch
          %141 = sbr.rel (%p139) target = $region28
        $region27: #{tpu_custom_call.1} parent=23 // pred_region
          %142 = dma.done %s135, 256
        $region28: #{tpu_custom_call.1} parent=23 // pred_fallthru
          _
        %s143 = sand.u32 %s45, 1
        %s144 = scalar_lea.sflag [#allocation5], %s143
        %s145 = sand.u32 %s45, 1
        %s146 = smul.addr %s145, 16
        %s147 = scalar_lea.vmem [#allocation4], %s146
        %p148 = pneg %p58
        %p149 = pneg %p55
        %p150 = pneg %p86
        %p151 = pneg %p83
        %s152 = sand.u32 %s73, 1
        %s153 = scalar_lea.sflag [#allocation6], %s152
        %s154 = sand.u32 %s73, 1
        %s155 = smul.addr %s154, 16
        %s156 = scalar_lea.vmem [#allocation7], %s155
        %s157 = smul.u32 %s28, 16
        %v158 = vld [vmem:[%s138] sm:$0xff]
        %v159 = vld [vmem:[%s138 + $0x8] sm:$0xff]
        %v160 = vmax.f32 %v158, -1.0
        %v161 = vmax.f32 %v159, -1.0
        %v162 = vmin.f32 %v160, 1.0
        %v163 = vmin.f32 %v161, 1.0
        %v164 = vlaneseq
        %v165 = vand.u32 %v164, 127
        %v166 = vstv %s157
        %v167 = vadd.s32 %v166, %v165
        %s168 = sld [smem:[#allocation3 + %s27]]
        %v169 = vstv %s168
        %vm170 = vcmp.lt.s32.totalorder %v167, %v169
        %v171 = vsel %vm170, %v162, 0.0
        %v172 = vsel %vm170, %v163, 0.0
        %vm173 = vcmask 130048
        %174 = vst.msk [vmem:[%s156] sm:$0xff] %vm173, %v171
        %175 = vst.msk [vmem:[%s156 + $0x8] sm:$0xff] %vm173, %v172
        %s176 = sand.u32 %s73, 1
        %s177 = scalar_lea.sflag [#allocation6], %s176
        %s178 = sand.u32 %s73, 1
        %s179 = smul.addr %s178, 16
        %s180 = scalar_lea.vmem [#allocation7], %s179
        // Predicated region
        $region29: #{tpu_custom_call.1} parent=23 // pred_check
          %p181 = pneg %p83
        $region30: #{tpu_custom_call.1} parent=23 // pred_check_branch
          %183 = sbr.rel (%p181) target = $region32
        $region31: #{tpu_custom_call.1} parent=23 // pred_region
          %s185 = ssub.s32 256, 256
          %186 = vsyncadd %s177, %s185
          %s187 = smul.addr %s27, 2
          %s188 = sadd.s32 %s28, %s187
          %s189 = smul.addr %s188, 128
          %s190 = scalar_lea.hbm %s2, %s189
          %s191 = sshll.u32 %s180, 4
          %s192 = int_to_ptr.vmem [resolvable:$true] %s191
          %197 = dma.vmem_to_hbm [thread:$0]  %s192, 256, %s190, %s177, 128, 128, 8
        $region32: #{tpu_custom_call.1} parent=23 // pred_fallthru
          _
      $region24: #{tpu_custom_call.1} parent=5 // pred_fallthru
        _
      %p198 = scmp.le.s32.totalorder 2, %s18
      // Predicated region
      $region33: #{tpu_custom_call.1} parent=5 // pred_check
        %p199 = pneg %p198
      $region34: #{tpu_custom_call.1} parent=5 // pred_check_branch
        %201 = sbr.rel (%p199) target = $region36
      $region35: #{tpu_custom_call.1} parent=5 // pred_region
        %s202 = ssub.s32 %s18, 2
        // Predicated region
        $region37: #{tpu_custom_call.1} parent=35 // pred_check
          %p203 = pneg %p89
        $region38: #{tpu_custom_call.1} parent=35 // pred_check_branch
          %205 = sbr.rel (%p203) target = $region40
        $region39: #{tpu_custom_call.1} parent=35 // pred_region
          %s206 = sand.u32 %s74, 1
          %s207 = scalar_lea.sflag [#allocation6], %s206
          %s208 = sand.u32 %s74, 1
          %s209 = smul.addr %s208, 16
          %s210 = scalar_lea.vmem [#allocation7], %s209
          %211 = dma.done %s207, 256
        $region40: #{tpu_custom_call.1} parent=35 // pred_fallthru
          _
      $region36: #{tpu_custom_call.1} parent=5 // pred_fallthru
        _
    $region6: #{tpu_custom_call.1} parent=1 // loop_footer
      %s22 = sadd.s32 1, %s18
    $region7: #{tpu_custom_call.1} parent=1 // loop_footer_branch
      %17 = sbr.rel target = $region3
    $region8: #{tpu_custom_call.1} parent=1 // loop_exit
      _
    %212 = vsyncpa [#allocation5], 1
    %s213 = scalar_lea.sflag [#allocation5], 1
    %214 = vsyncpa %s213, 1
    %215 = vsyncpa [#allocation6], 1
    %s216 = scalar_lea.sflag [#allocation6], 1
    %217 = vsyncpa %s216, 1

</llo_original>
